<compile_context>
chip_gen: v6e
topology: v6e:2x2x1
jax: 0.10.0
libtpu: 0.0.40
codegen_flags: <defaults>
</compile_context>

<pallas_src>
import functools
import math

import jax
import jax.numpy as jnp
from jax.experimental import pallas as pl
from jax.experimental.pallas import tpu as pltpu


_NEG_BIG = -1e30          # large finite negative; matches masked_fill(-finfo.max) safely
_VMEM_LIMIT = 32 * 1024 * 1024   # explicit scoped VMEM: safe on v5e/v6e (128 MiB) and v7x (64 MiB)


# ---------------------------------------------------------------------------
# helpers
# ---------------------------------------------------------------------------

def _pick_tile(size, cap, mults=(8,)):
    """Largest tile <= cap that divides `size` and is a multiple of one of `mults`
    (tried in preference order); falls back to the full dimension (always legal)."""
    if size <= cap:
        return size
    for mult in mults:
        t = (cap // mult) * mult
        while t >= mult:
            if size % t == 0:
                return t
            t -= mult
    return size


# ---------------------------------------------------------------------------
# 1+2) Fused RMSNorm + QKV projection kernel
#      F.normalize(x, -1) * sqrt(dim) * gamma, then x_norm @ W (bias-free)
# ---------------------------------------------------------------------------

def _rmsnorm_matmul_kernel(x_ref, g_ref, w_ref, o_ref, *, eps):
    x = x_ref[...].astype(jnp.float32)                 # (tm, dim)
    g = g_ref[...].astype(jnp.float32)                 # (1, dim); sqrt(dim) pre-folded into gamma
    ss = jnp.sum(x * x, axis=-1, keepdims=True)
    # 1 / max(||x||, eps) == rsqrt(max(ss, eps^2)); rsqrt -> EUP slot
    inv = jax.lax.rsqrt(jnp.maximum(ss, eps * eps))
    xn = (x * inv * g).astype(jnp.bfloat16)            # bf16 feed for the MXU
    o_ref[...] = jnp.dot(xn, w_ref[...].astype(jnp.bfloat16),
                         preferred_element_type=jnp.float32).astype(o_ref.dtype)


def rmsnorm_matmul(x2d, gamma, w, *, eps=1e-12, max_tm=512, max_tn=512):
    M, dim = x2d.shape
    dim2, N = w.shape
    assert dim == dim2
    # fold sqrt(dim) into gamma once outside the kernel
    g2d = (gamma.astype(jnp.float32) * (float(dim) ** 0.5)).reshape(1, dim)

    # keep each (rows x dim) / (dim x cols) tile under ~6 MiB so double-buffering fits VMEM
    row_budget = max(8, (6 * 1024 * 1024) // (dim * 4))
    tm = _pick_tile(M, min(max_tm, row_budget), (8,))
    tn = _pick_tile(N, min(max_tn, max(128, row_budget)), (256, 128))
    grid = (M // tm, N // tn)

    return pl.pallas_call(
        functools.partial(_rmsnorm_matmul_kernel, eps=eps),
        out_shape=jax.ShapeDtypeStruct((M, N), x2d.dtype),
        grid_spec=pltpu.PrefetchScalarGridSpec(
            num_scalar_prefetch=0,
            grid=grid,
            in_specs=[
                pl.BlockSpec((tm, dim), lambda i, j: (i, 0)),
                pl.BlockSpec((1, dim), lambda i, j: (0, 0)),
                pl.BlockSpec((dim, tn), lambda i, j: (0, j)),
            ],
            out_specs=pl.BlockSpec((tm, tn), lambda i, j: (i, j)),
        ),
        compiler_params=pltpu.CompilerParams(
            dimension_semantics=("parallel", "parallel"),
            vmem_limit_bytes=_VMEM_LIMIT),
    )(x2d, g2d, w)


# ---------------------------------------------------------------------------
# 4) Tiled matmul kernel (to_out projection): bf16 MXU feed, f32 accumulator
# ---------------------------------------------------------------------------

def _matmul_kernel(a_ref, b_ref, o_ref, acc_ref):
    @pl.when(pl.program_id(2) == 0)
    def _():
        acc_ref[...] = jnp.zeros_like(acc_ref)

    acc_ref[...] += jnp.dot(a_ref[...].astype(jnp.bfloat16),
                            b_ref[...].astype(jnp.bfloat16),
                            preferred_element_type=jnp.float32)

    @pl.when(pl.program_id(2) == pl.num_programs(2) - 1)
    def _():
        o_ref[...] = acc_ref[...].astype(o_ref.dtype)


def matmul(a, b, *, max_tm=256, max_tn=256, max_tk=512):
    M, K = a.shape
    K2, N = b.shape
    assert K == K2
    tm = _pick_tile(M, max_tm, (8,))
    tn = _pick_tile(N, max_tn, (256, 128))   # 256-aligned preferred for v6e/v7x MXU
    tk = _pick_tile(K, max_tk, (256, 128))
    grid = (M // tm, N // tn, K // tk)
    return pl.pallas_call(
        _matmul_kernel,
        out_shape=jax.ShapeDtypeStruct((M, N), a.dtype),
        grid_spec=pltpu.PrefetchScalarGridSpec(
            num_scalar_prefetch=0,
            grid=grid,
            in_specs=[
                pl.BlockSpec((tm, tk), lambda i, j, k: (i, k)),
                pl.BlockSpec((tk, tn), lambda i, j, k: (k, j)),
            ],
            out_specs=pl.BlockSpec((tm, tn), lambda i, j, k: (i, j)),
            scratch_shapes=[pltpu.VMEM((tm, tn), jnp.float32)],
        ),
        compiler_params=pltpu.CompilerParams(
            dimension_semantics=("parallel", "parallel", "arbitrary"),
            vmem_limit_bytes=_VMEM_LIMIT),
    )(a, b)


# ---------------------------------------------------------------------------
# 3) Causal flash attention on the packed '(qkv h d)' projection
#    grid = (batch, q_blocks, kv_blocks); all heads handled per grid step
# ---------------------------------------------------------------------------

def _attn_update(qi, ki, q_ref, k_ref, v_ref, m_sc, l_sc, acc_sc,
                 *, scale, heads, d, bq, bk, masked):
    # scale folded into q once per block (not per kv step per the s matrix)
    q = (q_ref[...].astype(jnp.float32) * scale).astype(jnp.bfloat16)   # (bq, h*d)
    k = k_ref[...].astype(jnp.bfloat16)                                  # (bk, h*d)
    v = v_ref[...].astype(jnp.bfloat16)                                  # (bk, h*d)

    if masked:
        q_idx = qi * bq + jax.lax.broadcasted_iota(jnp.int32, (bq, bk), 0)
        k_idx = ki * bk + jax.lax.broadcasted_iota(jnp.int32, (bq, bk), 1)
        visible = k_idx <= q_idx                                         # shared by all heads

    m_all = m_sc[...]        # (bq, heads)
    l_all = l_sc[...]        # (bq, heads)
    acc_all = acc_sc[...]    # (bq, h*d)

    new_m, new_l, new_acc = [], [], []
    for hh in range(heads):                      # static, unrolled
        sl = slice(hh * d, (hh + 1) * d)
        s = jax.lax.dot_general(q[:, sl], k[:, sl],
                                (((1,), (1,)), ((), ())),
                                preferred_element_type=jnp.float32)      # (bq, bk)
        if masked:
            s = jnp.where(visible, s, _NEG_BIG)

        m_prev = m_all[:, hh:hh + 1]
        m_new = jnp.maximum(m_prev, s.max(axis=-1, keepdims=True))
        alpha = jnp.exp(m_prev - m_new)
        p = jnp.exp(s - m_new)
        pv = jax.lax.dot_general(p.astype(jnp.bfloat16), v[:, sl],
                                 (((1,), (0,)), ((), ())),
                                 preferred_element_type=jnp.float32)     # (bq, d)
        new_m.append(m_new)
        new_l.append(alpha * l_all[:, hh:hh + 1] + p.sum(axis=-1, keepdims=True))
        new_acc.append(alpha * acc_all[:, sl] + pv)

    # single lane-dense write-back per scratch
    m_sc[...] = jnp.concatenate(new_m, axis=-1)
    l_sc[...] = jnp.concatenate(new_l, axis=-1)
    acc_sc[...] = jnp.concatenate(new_acc, axis=-1)


def _causal_flash_kernel(q_ref, k_ref, v_ref, o_ref, m_sc, l_sc, acc_sc,
                         *, scale, heads, d, bq, bk):
    qi = pl.program_id(1)
    ki = pl.program_id(2)

    @pl.when(ki == 0)
    def _():
        m_sc[...] = jnp.full_like(m_sc, -jnp.inf)
        l_sc[...] = jnp.zeros_like(l_sc)
        acc_sc[...] = jnp.zeros_like(acc_sc)

    last_needed = (qi * bq + bq - 1) // bk            # last kv block with any visible key
    needed = ki <= last_needed
    straddles = ki * bk + (bk - 1) > qi * bq          # block crosses the causal diagonal

    body = functools.partial(_attn_update, qi, ki, q_ref, k_ref, v_ref,
                             m_sc, l_sc, acc_sc,
                             scale=scale, heads=heads, d=d, bq=bq, bk=bk)

    @pl.when(jnp.logical_and(needed, straddles))
    def _():
        body(masked=True)

    @pl.when(jnp.logical_and(needed, jnp.logical_not(straddles)))
    def _():
        body(masked=False)                            # mask-free fast path

    @pl.when(ki == pl.num_programs(2) - 1)
    def _():
        inv_l = 1.0 / l_sc[...]                       # exact divide (done once per q block)
        acc = acc_sc[...]
        parts = [acc[:, hh * d:(hh + 1) * d] * inv_l[:, hh:hh + 1] for hh in range(heads)]
        o_ref[...] = jnp.concatenate(parts, axis=-1).astype(o_ref.dtype)   # lane-dense store


def causal_flash_attention(qkv, *, heads, dim_head, scale, max_bq=512, max_bk=512):
    """qkv: (b, n, 3*heads*dim_head) packed '(qkv h d)' -> (b, n, heads*dim_head)."""
    b, n, three_inner = qkv.shape
    dim_inner = heads * dim_head
    assert three_inner == 3 * dim_inner

    bq = _pick_tile(n, max_bq, (8,))
    bk = _pick_tile(n, max_bk, (128, 8))   # keep the score matrix lane-dense when possible
    grid = (b, n // bq, n // bk)

    def q_index(bb, i, j):
        return (bb, i, 0)

    def kv_index(slot):
        # clamp fully-future causal blocks to the last needed block: the repeated
        # block index means Pallas issues no new HBM copy for them.
        def index(bb, i, j):
            return (bb, jnp.minimum(j, (i * bq + bq - 1) // bk), slot)
        return index

    kernel = functools.partial(_causal_flash_kernel, scale=scale,
                               heads=heads, d=dim_head, bq=bq, bk=bk)
    return pl.pallas_call(
        kernel,
        out_shape=jax.ShapeDtypeStruct((b, n, dim_inner), qkv.dtype),
        grid_spec=pltpu.PrefetchScalarGridSpec(
            num_scalar_prefetch=0,
            grid=grid,
            in_specs=[
                pl.BlockSpec((None, bq, dim_inner), q_index),
                pl.BlockSpec((None, bk, dim_inner), kv_index(1)),
                pl.BlockSpec((None, bk, dim_inner), kv_index(2)),
            ],
            out_specs=pl.BlockSpec((None, bq, dim_inner), lambda bb, i, j: (bb, i, 0)),
            scratch_shapes=[
                pltpu.VMEM((bq, heads), jnp.float32),       # running max (per head column)
                pltpu.VMEM((bq, heads), jnp.float32),       # running denom
                pltpu.VMEM((bq, dim_inner), jnp.float32),   # accumulator (lane-dense)
            ],
        ),
        compiler_params=pltpu.CompilerParams(
            dimension_semantics=("parallel", "parallel", "arbitrary"),
            vmem_limit_bytes=_VMEM_LIMIT),
    )(qkv, qkv, qkv)


# ---------------------------------------------------------------------------
# Full CausalAttention forward
# ---------------------------------------------------------------------------

def causal_attention(x, gamma, w_qkv, w_out, *, heads, dim_head):
    b, n, dim = x.shape
    dim_inner = heads * dim_head
    scale = float(dim_head) ** -0.5

    # 1+2) RMSNorm fused into the QKV projection (Pallas, bf16 MXU feed)
    qkv = rmsnorm_matmul(x.reshape(b * n, dim), gamma, w_qkv)       # (b*n, 3*dim_inner)
    qkv = qkv.reshape(b, n, 3 * dim_inner)                          # free reshape

    # cached_kv must be (b, 2, h, n, d) per the module contract -> transpose only here
    qkv5 = qkv.reshape(b, n, 3, heads, dim_head)
    k_c = jnp.transpose(qkv5[:, :, 1], (0, 2, 1, 3))
    v_c = jnp.transpose(qkv5[:, :, 2], (0, 2, 1, 3))
    cached_kv = jnp.stack((k_c, v_c), axis=1)                       # (b, 2, h, n, d)

    # TODO(synk): optional cache concat, context_mask and rotary_emb (all default
    # None in the reference forward) are not implemented in the Pallas path.

    # 3) causal flash attention straight off the packed qkv (no wrapper transposes)
    o = causal_flash_attention(qkv, heads=heads, dim_head=dim_head, scale=scale)  # (b, n, h*d)

    # 4) output projection (Pallas matmul, bf16 MXU feed)
    out = matmul(o.reshape(b * n, dim_inner), w_out).reshape(b, n, dim)
    return out, cached_kv


# ---------------------------------------------------------------------------
# Pure-JAX reference (mirrors the PyTorch module, full f32)
# ---------------------------------------------------------------------------

def causal_attention_ref(x, gamma, w_qkv, w_out, *, heads, dim_head):
    b, n, dim = x.shape
    scale = float(dim_head) ** -0.5
    norm = jnp.sqrt(jnp.sum(x.astype(jnp.float32) ** 2, axis=-1, keepdims=True))
    xn = x / jnp.maximum(norm, 1e-12) * (float(dim) ** 0.5) * gamma
    qkv = xn @ w_qkv
    qkv = qkv.reshape(b, n, 3, heads, dim_head)
    q, k, v = (jnp.transpose(qkv[:, :, i], (0, 2, 1, 3)) for i in range(3))
    sim = jnp.einsum('bhid,bhjd->bhij', q, k) * scale
    causal = jnp.triu(jnp.ones((n, n), dtype=bool), k=1)
    sim = jnp.where(causal, -jnp.finfo(sim.dtype).max, sim)
    attn = jax.nn.softmax(sim, axis=-1)
    o = jnp.einsum('bhij,bhjd->bhid', attn, v)
    o = jnp.transpose(o, (0, 2, 1, 3)).reshape(b, n, heads * dim_head)
    out = o @ w_out
    cached_kv = jnp.stack((k, v), axis=1)
    return out, cached_kv


if __name__ == "__main__":
    key = jax.random.PRNGKey(0)
    batch, seq, dim = 2, 8, 128
    heads, dim_head = 4, 32
    dim_inner = heads * dim_head

    kx, kq, ko = jax.random.split(key, 3)
    x = jax.random.normal(kx, (batch, seq, dim), dtype=jnp.float32)
    gamma = jnp.ones((dim,), dtype=jnp.float32)   # nn.Parameter(torch.ones(dim))
    w_qkv = jax.random.normal(kq, (dim, dim_inner * 3), dtype=jnp.float32) * (dim ** -0.5)
    w_out = jax.random.normal(ko, (dim_inner, dim), dtype=jnp.float32) * (dim_inner ** -0.5)

    out, cached_kv = causal_attention(x, gamma, w_qkv, w_out,
                                      heads=heads, dim_head=dim_head)
    out = jax.block_until_ready(out)
    cached_kv = jax.block_until_ready(cached_kv)

    out_ref, cached_ref = causal_attention_ref(x, gamma, w_qkv, w_out,
                                               heads=heads, dim_head=dim_head)
    assert out.shape == (batch, seq, dim)
    assert cached_kv.shape == (batch, 2, heads, seq, dim_head)
    # bf16 MXU feeds (f32 accumulation) -> slightly looser tolerance than pure f32
    assert jnp.allclose(out, out_ref, atol=2e-2, rtol=2e-2), "attention output mismatch"
    assert jnp.allclose(cached_kv, cached_ref, atol=2e-2, rtol=2e-2), "kv cache mismatch"

    print("KERNEL_OK")
</pallas_src>

<mosaic_0001>
module attributes {stable_mosaic.version = 11 : i64} {
  func.func @_rmsnorm_matmul_kernel(%arg0: i32, %arg1: i32, %arg2: memref<16x128xf32, #tpu.memory_space<vmem>>, %arg3: memref<1x128xf32, #tpu.memory_space<vmem>>, %arg4: memref<128x384xf32, #tpu.memory_space<vmem>>, %arg5: memref<16x384xf32, #tpu.memory_space<vmem>>) attributes {dimension_semantics = [#tpu.dimension_semantics<parallel>, #tpu.dimension_semantics<parallel>], iteration_bounds = array<i64: 1, 1>, scalar_prefetch = 0 : i64, scratch_operands = 0 : i64, tpu.core_type = #tpu.core_type<tc>, window_params = [{transform_indices = @transform_0, window_bounds = array<i64: 16, 128>}, {pipeline_mode = #tpu.pipeline_mode<synchronous>, transform_indices = @transform_1, window_bounds = array<i64: 1, 128>}, {transform_indices = @transform_2, window_bounds = array<i64: 128, 384>}, {transform_indices = @transform_3, window_bounds = array<i64: 16, 384>}]} {
    %c0 = arith.constant 0 : index
    %c0_0 = arith.constant 0 : index
    %0 = vector.load %arg2[%c0, %c0_0] : memref<16x128xf32, #tpu.memory_space<vmem>>, vector<16x128xf32>
    %c0_1 = arith.constant 0 : index
    %c0_2 = arith.constant 0 : index
    %1 = vector.load %arg3[%c0_1, %c0_2] : memref<1x128xf32, #tpu.memory_space<vmem>>, vector<1x128xf32>
    %2 = arith.mulf %0, %0 : vector<16x128xf32>
    %cst = arith.constant dense<0.000000e+00> : vector<16xf32>
    %3 = vector.multi_reduction <add>, %2, %cst [1] : vector<16x128xf32> to vector<16xf32>
    %4 = vector.shape_cast %3 : vector<16xf32> to vector<16x1xf32>
    %cst_3 = arith.constant 1.000000e-24 : f32
    %5 = vector.broadcast %cst_3 : f32 to vector<16x1xf32>
    %6 = arith.maximumf %4, %5 : vector<16x1xf32>
    %7 = math.rsqrt %6 : vector<16x1xf32>
    %8 = vector.broadcast %7 : vector<16x1xf32> to vector<16x128xf32>
    %9 = arith.mulf %0, %8 : vector<16x128xf32>
    %10 = vector.broadcast %1 : vector<1x128xf32> to vector<16x128xf32>
    %11 = arith.mulf %9, %10 : vector<16x128xf32>
    %12 = arith.truncf %11 : vector<16x128xf32> to vector<16x128xbf16>
    %c0_4 = arith.constant 0 : index
    %c0_5 = arith.constant 0 : index
    %13 = vector.load %arg4[%c0_4, %c0_5] : memref<128x384xf32, #tpu.memory_space<vmem>>, vector<128x384xf32>
    %14 = arith.truncf %13 : vector<128x384xf32> to vector<128x384xbf16>
    %cst_6 = arith.constant dense<0.000000e+00> : vector<16x384xf32>
    %15 = tpu.matmul %12, %14, %cst_6 {dimension_numbers = #tpu.dot_dimension_numbers<[1], [0], [0], [1], [0, 0, 1, 1], [], []>} : vector<16x128xbf16>, vector<128x384xbf16>, vector<16x384xf32> -> vector<16x384xf32>
    %c0_7 = arith.constant 0 : index
    %c0_8 = arith.constant 0 : index
    %16 = vector.load %arg5[%c0_7, %c0_8] : memref<16x384xf32, #tpu.memory_space<vmem>>, vector<16x384xf32>
    tpu.vector_store %arg5[%c0_7, %c0_8], %15 {strides = array<i32>} : memref<16x384xf32, #tpu.memory_space<vmem>>, vector<16x384xf32>,
    return
  }
  func.func @transform_0(%arg0: i32, %arg1: i32) -> (i32, i32) {
    %c0_i32 = arith.constant 0 : i32
    %c0_i32_0 = arith.constant 0 : i32
    return %arg0, %c0_i32 : i32, i32
  }
  func.func @transform_1(%arg0: i32, %arg1: i32) -> (i32, i32) {
    %c0_i32 = arith.constant 0 : i32
    %c0_i32_0 = arith.constant 0 : i32
    %c0_i32_1 = arith.constant 0 : i32
    return %c0_i32, %c0_i32_0 : i32, i32
  }
  func.func @transform_2(%arg0: i32, %arg1: i32) -> (i32, i32) {
    %c0_i32 = arith.constant 0 : i32
    %c0_i32_0 = arith.constant 0 : i32
    return %c0_i32, %arg1 : i32, i32
  }
  func.func @transform_3(%arg0: i32, %arg1: i32) -> (i32, i32) {
    %c0_i32 = arith.constant 0 : i32
    return %arg0, %arg1 : i32, i32
  }
}

</mosaic_0001>

<llo_original>
// kernel: tpu_custom_call.1
$region0: #{tpu_custom_call.1}
  #allocation0 [shape = 'u32[]', space=smem, size = 0x4, offset = 0x4, fixed_abs, tag = 'smem constant byte address 0x4 - core index']
  #allocation1 [shape = 'u32[144,128]{1,0:T(1,128)}', space=vmem, size = 0x12000, scoped, tag = 'internal scratch']
  %s0 = inlined_call_operand.hbm [shape: f32[16,128], index: 0, kind: input, shape index: {}]
  %s1 = inlined_call_operand.vmem [shape: f32[1,128], index: 1, kind: input, shape index: {}]
  %s2 = inlined_call_operand.hbm [shape: f32[128,384], index: 2, kind: input, shape index: {}]
  %s3 = inlined_call_operand.hbm [shape: f32[16,384], index: 3, kind: output, shape index: {}]
  %s4 = sld [smem:[#allocation0]]
  $region30: #{tpu_custom_call.1} parent=0
    _
  %s6 = ssub.s32 1, %s4
  %s7 = scalar_select 0, %s6, %s4
  $region1: #{tpu_custom_call.1} parent=0
    #allocation2 [shape = 'u8[8192]{0}', space=vmem, size = 0x2000, scoped, tag = 'input window, operand 0, single buffered']
    #allocation3 [shape = 's32[1]{0}', space=sflag, size = 0x4, scoped, tag = 'scoped memory for tpu_custom_call.1']
    #allocation4 [shape = 's32[1]{0}', space=sflag, size = 0x4, scoped, tag = 'scoped memory for tpu_custom_call.1']
    #allocation5 [shape = 'u8[196608]{0}', space=vmem, size = 0x30000, scoped, tag = 'input window, operand 2, single buffered']
    #allocation6 [shape = 's32[1]{0}', space=sflag, size = 0x4, scoped, tag = 'scoped memory for tpu_custom_call.1']
    #allocation7 [shape = 'u8[24576]{0}', space=vmem, size = 0x6000, scoped, tag = 'output window, operand 0, single buffered']
    %8 = vsyncpa [#allocation3], 0
    %9 = vsyncpa [#allocation6], 0
    %10 = vsyncpa [#allocation4], 0
    // Predicated region
    $region2: #{tpu_custom_call.1} parent=1 // pred_check
      _
    $region3: #{tpu_custom_call.1} parent=1 // pred_check_branch
      %12 = sbr.rel (0) target = $region5
    $region4: #{tpu_custom_call.1} parent=1 // pred_region
      %s14 = ssub.s32 256, 256
      %15 = vsyncadd [#allocation3], %s14
      %s16 = sshll.u32 [#allocation2], 4
      %s17 = int_to_ptr.vmem [resolvable:$true] %s16
      %22 = dma.hbm_to_vmem [thread:$0]  %s0, 256, %s17, [#allocation3], 128, 128, 8
    $region5: #{tpu_custom_call.1} parent=1 // pred_fallthru
      _
    // Predicated region
    $region6: #{tpu_custom_call.1} parent=1 // pred_check
      _
    $region7: #{tpu_custom_call.1} parent=1 // pred_check_branch
      %24 = sbr.rel (0) target = $region9
    $region8: #{tpu_custom_call.1} parent=1 // pred_region
      _
    $region9: #{tpu_custom_call.1} parent=1 // pred_fallthru
      _
    // Predicated region
    $region10: #{tpu_custom_call.1} parent=1 // pred_check
      _
    $region11: #{tpu_custom_call.1} parent=1 // pred_check_branch
      %26 = sbr.rel (0) target = $region13
    $region12: #{tpu_custom_call.1} parent=1 // pred_region
      %s28 = ssub.s32 6144, 6144
      %29 = vsyncadd [#allocation6], %s28
      %s30 = sshll.u32 [#allocation5], 4
      %s31 = int_to_ptr.vmem [resolvable:$true] %s30
      %36 = dma.hbm_to_vmem [thread:$0]  %s2, 6144, %s31, [#allocation6], 384, 384, 24
    $region13: #{tpu_custom_call.1} parent=1 // pred_fallthru
      _
    // Predicated region
    $region14: #{tpu_custom_call.1} parent=1 // pred_check
      _
    $region15: #{tpu_custom_call.1} parent=1 // pred_check_branch
      %38 = sbr.rel (0) target = $region17
    $region16: #{tpu_custom_call.1} parent=1 // pred_region
      %39 = dma.done [#allocation3], 256
    $region17: #{tpu_custom_call.1} parent=1 // pred_fallthru
      _
    // Predicated region
    $region18: #{tpu_custom_call.1} parent=1 // pred_check
      _
    $region19: #{tpu_custom_call.1} parent=1 // pred_check_branch
      %41 = sbr.rel (0) target = $region21
    $region20: #{tpu_custom_call.1} parent=1 // pred_region
      %42 = dma.done [#allocation6], 6144
    $region21: #{tpu_custom_call.1} parent=1 // pred_fallthru
      _
    %v44 = vld [vmem:[#allocation2] sm:$0xff]
    %v45 = vld [vmem:[#allocation2 + $0x8] sm:$0xff]
    %v46 = vld [vmem:[%s1] sm:$0x1]
    %v47 = vmul.f32 %v44, %v44
    %v48 = vmul.f32 %v45, %v45
    %49 = vadd.xlane.f32.xlu0 %v47
    %v50 = vpop.xlane.xlu0 %49
    %51 = vadd.xlane.f32.xlu0 %v48
    %v52 = vpop.xlane.xlu0 %51
    %v53 = vmax.f32 %v50, 1e-24
    %v54 = vmax.f32 %v52, 1e-24
    %v55 = vrsqrt.pop %v53
    %v56 = vrsqrt.pop %v54
    %v57 = vmul.f32 %v44, %v55
    %v58 = vmul.f32 %v45, %v56
    %v60 = vlaneseq
    %v61 = vshrl.u32 %v60, 7
    %v62 = vsub.s32 0, %v61
    %v63 = vrot.slane %v46, %v62
    %v65 = vmul.f32 %v57, %v63
    %v66 = vmul.f32 %v58, %v63
    %v67 = vpack.c.bf16 %v66, %v65
    %v68 = vld [vmem:[#allocation5] sm:$0xff]
    %v69 = vld [vmem:[#allocation5 + $0x8] sm:$0xff]
    %v70 = vld [vmem:[#allocation5 + $0x10] sm:$0xff]
    %v71 = vld [vmem:[#allocation5 + $0x18] sm:$0xff]
    %v72 = vld [vmem:[#allocation5 + $0x20] sm:$0xff]
    %v73 = vld [vmem:[#allocation5 + $0x28] sm:$0xff]
    %v74 = vld [vmem:[#allocation5 + $0x30] sm:$0xff]
    %v75 = vld [vmem:[#allocation5 + $0x38] sm:$0xff]
    %v76 = vld [vmem:[#allocation5 + $0x40] sm:$0xff]
    %v77 = vld [vmem:[#allocation5 + $0x48] sm:$0xff]
    %v78 = vld [vmem:[#allocation5 + $0x50] sm:$0xff]
    %v79 = vld [vmem:[#allocation5 + $0x58] sm:$0xff]
    %v80 = vld [vmem:[#allocation5 + $0x60] sm:$0xff]
    %v81 = vld [vmem:[#allocation5 + $0x68] sm:$0xff]
    %v82 = vld [vmem:[#allocation5 + $0x70] sm:$0xff]
    %v83 = vld [vmem:[#allocation5 + $0x78] sm:$0xff]
    %v84 = vld [vmem:[#allocation5 + $0x80] sm:$0xff]
    %v85 = vld [vmem:[#allocation5 + $0x88] sm:$0xff]
    %v86 = vld [vmem:[#allocation5 + $0x90] sm:$0xff]
    %v87 = vld [vmem:[#allocation5 + $0x98] sm:$0xff]
    %v88 = vld [vmem:[#allocation5 + $0xa0] sm:$0xff]
    %v89 = vld [vmem:[#allocation5 + $0xa8] sm:$0xff]
    %v90 = vld [vmem:[#allocation5 + $0xb0] sm:$0xff]
    %v91 = vld [vmem:[#allocation5 + $0xb8] sm:$0xff]
    %v92 = vld [vmem:[#allocation5 + $0xc0] sm:$0xff]
    %v93 = vld [vmem:[#allocation5 + $0xc8] sm:$0xff]
    %v94 = vld [vmem:[#allocation5 + $0xd0] sm:$0xff]
    %v95 = vld [vmem:[#allocation5 + $0xd8] sm:$0xff]
    %v96 = vld [vmem:[#allocation5 + $0xe0] sm:$0xff]
    %v97 = vld [vmem:[#allocation5 + $0xe8] sm:$0xff]
    %v98 = vld [vmem:[#allocation5 + $0xf0] sm:$0xff]
    %v99 = vld [vmem:[#allocation5 + $0xf8] sm:$0xff]
    %v100 = vld [vmem:[#allocation5 + $0x100] sm:$0xff]
    %v101 = vld [vmem:[#allocation5 + $0x108] sm:$0xff]
    %v102 = vld [vmem:[#allocation5 + $0x110] sm:$0xff]
    %v103 = vld [vmem:[#allocation5 + $0x118] sm:$0xff]
    %v104 = vld [vmem:[#allocation5 + $0x120] sm:$0xff]
    %v105 = vld [vmem:[#allocation5 + $0x128] sm:$0xff]
    %v106 = vld [vmem:[#allocation5 + $0x130] sm:$0xff]
    %v107 = vld [vmem:[#allocation5 + $0x138] sm:$0xff]
    %v108 = vld [vmem:[#allocation5 + $0x140] sm:$0xff]
    %v109 = vld [vmem:[#allocation5 + $0x148] sm:$0xff]
    %v110 = vld [vmem:[#allocation5 + $0x150] sm:$0xff]
    %v111 = vld [vmem:[#allocation5 + $0x158] sm:$0xff]
    %v112 = vld [vmem:[#allocation5 + $0x160] sm:$0xff]
    %v113 = vld [vmem:[#allocation5 + $0x168] sm:$0xff]
    %v114 = vld [vmem:[#allocation5 + $0x170] sm:$0xff]
    %v115 = vld [vmem:[#allocation5 + $0x178] sm:$0xff]
    %v116 = vpack.c.bf16 %v71, %v68
    %v117 = vpack.c.bf16 %v72, %v69
    %v118 = vpack.c.bf16 %v73, %v70
    %v119 = vpack.c.bf16 %v77, %v74
    %v120 = vpack.c.bf16 %v78, %v75
    %v121 = vpack.c.bf16 %v79, %v76
    %v122 = vpack.c.bf16 %v83, %v80
    %v123 = vpack.c.bf16 %v84, %v81
    %v124 = vpack.c.bf16 %v85, %v82
    %v125 = vpack.c.bf16 %v89, %v86
    %v126 = vpack.c.bf16 %v90, %v87
    %v127 = vpack.c.bf16 %v91, %v88
    %v128 = vpack.c.bf16 %v95, %v92
    %v129 = vpack.c.bf16 %v96, %v93
    %v130 = vpack.c.bf16 %v97, %v94
    %v131 = vpack.c.bf16 %v101, %v98
    %v132 = vpack.c.bf16 %v102, %v99
    %v133 = vpack.c.bf16 %v103, %v100
    %v134 = vpack.c.bf16 %v107, %v104
    %v135 = vpack.c.bf16 %v108, %v105
    %v136 = vpack.c.bf16 %v109, %v106
    %v137 = vpack.c.bf16 %v113, %v110
    %v138 = vpack.c.bf16 %v114, %v111
    %v139 = vpack.c.bf16 %v115, %v112
    %140 = vmatprep.subr.bf16.mxu0 %v138
    %141 = vmatpush1.bf16.msra.mxu0 %v137
    %142 = vmatprep.subr.bf16.mxu0 %v135
    %143 = vmatpush1.bf16.msra.mxu0 %v134
    %144 = vmatprep.subr.bf16.mxu0 %v132
    %145 = vmatpush1.bf16.msra.mxu0 %v131
    %146 = vmatprep.subr.bf16.mxu0 %v129
    %147 = vmatpush1.bf16.msra.mxu0 %v128
    %148 = vmatprep.subr.bf16.mxu0 %v126
    %149 = vmatpush1.bf16.msra.mxu0 %v125
    %150 = vmatprep.subr.bf16.mxu0 %v123
    %151 = vmatpush1.bf16.msra.mxu0 %v122
    %152 = vmatprep.subr.bf16.mxu0 %v120
    %153 = vmatpush1.bf16.msra.mxu0 %v119
    %154 = vmatprep.subr.bf16.mxu0 %v117
    %155 = vmatpush1.bf16.msra.mxu0 %v116
    %156 = vmatprep.subr.bf16.mxu0 0
    %157 = vmatpush2.bf16.msra.mxu0 0
    %158 = vmatprep.subr.bf16.mxu0 0
    %159 = vmatpush2.bf16.msra.mxu0 0
    %160 = vmatprep.subr.bf16.mxu0 0
    %161 = vmatpush2.bf16.msra.mxu0 0
    %162 = vmatprep.subr.bf16.mxu0 0
    %163 = vmatpush2.bf16.msra.mxu0 0
    %164 = vmatprep.subr.bf16.mxu0 0
    %165 = vmatpush2.bf16.msra.mxu0 0
    %166 = vmatprep.subr.bf16.mxu0 0
    %167 = vmatpush2.bf16.msra.mxu0 0
    %168 = vmatprep.subr.bf16.mxu0 0
    %169 = vmatpush2.bf16.msra.mxu0 0
    %170 = vmatprep.subr.bf16.mxu0 0
    %171 = vmatpush2.bf16.msra.mxu0 0
    %172 = vmatprep.mubr.bf16.mxu0 0
    %173 = vmatmul.mubr.bf16.gmra.mxu0 %v67
    %v174 = vpop.f32.mrf.mxu0
    %v175 = vadd.f32 0.0, %v174
    %v176 = vpop.f32.mrf.mxu0
    %v177 = vadd.f32 0.0, %v176
    %v178 = vpop.f32.mrf.mxu0
    %v179 = vadd.f32 0.0, %v178
    %v180 = vpop.f32.mrf.mxu0
    %v181 = vadd.f32 0.0, %v180
    %182 = vdwg.mxu0
    %183 = vmatprep.subr.bf16.mxu0 0
    %184 = vmatpush1.bf16.msra.mxu0 %v139
    %185 = vmatprep.subr.bf16.mxu0 0
    %186 = vmatpush1.bf16.msra.mxu0 %v136
    %187 = vmatprep.subr.bf16.mxu0 0
    %188 = vmatpush1.bf16.msra.mxu0 %v133
    %189 = vmatprep.subr.bf16.mxu0 0
    %190 = vmatpush1.bf16.msra.mxu0 %v130
    %191 = vmatprep.subr.bf16.mxu0 0
    %192 = vmatpush1.bf16.msra.mxu0 %v127
    %193 = vmatprep.subr.bf16.mxu0 0
    %194 = vmatpush1.bf16.msra.mxu0 %v124
    %195 = vmatprep.subr.bf16.mxu0 0
    %196 = vmatpush1.bf16.msra.mxu0 %v121
    %197 = vmatprep.subr.bf16.mxu0 0
    %198 = vmatpush1.bf16.msra.mxu0 %v118
    %199 = vmatprep.subr.bf16.mxu0 0
    %200 = vmatpush2.bf16.msra.mxu0 0
    %201 = vmatprep.subr.bf16.mxu0 0
    %202 = vmatpush2.bf16.msra.mxu0 0
    %203 = vmatprep.subr.bf16.mxu0 0
    %204 = vmatpush2.bf16.msra.mxu0 0
    %205 = vmatprep.subr.bf16.mxu0 0
    %206 = vmatpush2.bf16.msra.mxu0 0
    %207 = vmatprep.subr.bf16.mxu0 0
    %208 = vmatpush2.bf16.msra.mxu0 0
    %209 = vmatprep.subr.bf16.mxu0 0
    %210 = vmatpush2.bf16.msra.mxu0 0
    %211 = vmatprep.subr.bf16.mxu0 0
    %212 = vmatpush2.bf16.msra.mxu0 0
    %213 = vmatprep.subr.bf16.mxu0 0
    %214 = vmatpush2.bf16.msra.mxu0 0
    %215 = vmatprep.mubr.bf16.mxu0 0
    %216 = vmatmul.mubr.bf16.gmra.mxu0 %v67
    %v217 = vpop.f32.mrf.mxu0
    %v218 = vadd.f32 0.0, %v217
    %v219 = vpop.f32.mrf.mxu0
    %v220 = vpop.f32.mrf.mxu0
    %v221 = vadd.f32 0.0, %v220
    %v222 = vpop.f32.mrf.mxu0
    %223 = vdwg.mxu0
    %224 = vst [vmem:[#allocation7] sm:$0xff] %v175
    %225 = vst [vmem:[#allocation7 + $0x8] sm:$0xff] %v177
    %226 = vst [vmem:[#allocation7 + $0x10] sm:$0xff] %v218
    %227 = vst [vmem:[#allocation7 + $0x18] sm:$0xff] %v179
    %228 = vst [vmem:[#allocation7 + $0x20] sm:$0xff] %v181
    %229 = vst [vmem:[#allocation7 + $0x28] sm:$0xff] %v221
    // Predicated region
    $region22: #{tpu_custom_call.1} parent=1 // pred_check
      _
    $region23: #{tpu_custom_call.1} parent=1 // pred_check_branch
      %231 = sbr.rel (0) target = $region25
    $region24: #{tpu_custom_call.1} parent=1 // pred_region
      %s233 = ssub.s32 768, 768
      %234 = vsyncadd [#allocation4], %s233
      %s235 = sshll.u32 [#allocation7], 4
      %s236 = int_to_ptr.vmem [resolvable:$true] %s235
      %241 = dma.vmem_to_hbm [thread:$0]  %s236, 768, %s3, [#allocation4], 384, 384, 24
    $region25: #{tpu_custom_call.1} parent=1 // pred_fallthru
      _
    // Predicated region
    $region26: #{tpu_custom_call.1} parent=1 // pred_check
      _
    $region27: #{tpu_custom_call.1} parent=1 // pred_check_branch
      %243 = sbr.rel (0) target = $region29
    $region28: #{tpu_custom_call.1} parent=1 // pred_region
      %244 = dma.done [#allocation4], 768
    $region29: #{tpu_custom_call.1} parent=1 // pred_fallthru
      _
    %245 = vsyncpa [#allocation3], 1
    %246 = vsyncpa [#allocation6], 1
    %247 = vsyncpa [#allocation4], 1

</llo_original>
